<compile_context>
chip_gen: v7x
topology: tpu7x:2x2x1
jax: 0.10.0
libtpu: 0.0.40
codegen_flags: <defaults>
</compile_context>

<pallas_src>
import functools

import numpy as np
import jax
import jax.numpy as jnp
from jax.experimental import pallas as pl
from jax.experimental.pallas import tpu as pltpu

OUT_FEATURES = 4
LANE = 128
SUBLANE = 8


def _round_up(x, m):
    return ((x + m - 1) // m) * m


def linear_kernel(x_ref, wb_ref, o_ref):
    """x_ref: (tm, D) f32, wb_ref: (round_up(D,8)+8, 128) f32, o_ref: (tm, out_lanes) f32."""
    d = x_ref.shape[1]                       # static: true (unpadded) feature dim
    d8 = wb_ref.shape[0] - SUBLANE           # static: bias row offset
    w = wb_ref[0:d, :]                       # (D, 128)  W^T, zero in lanes >= 4
    b = wb_ref[d8:d8 + 1, :]                 # (1, 128)  bias in lanes 0..3
    acc = jnp.dot(x_ref[...], w, preferred_element_type=jnp.float32) + b
    # Full 128-lane store for small N (no-op slice); narrow 8-lane store for the
    # large-N mem-bound regime to cut HBM writeback 16x.
    o_ref[...] = acc[:, : o_ref.shape[1]]


def prepare_params(weight, bias):
    """One-time packing of nn.Linear params (weight: (4, D), bias: (4,)) into a
    single lane-dense f32 slab of shape (round_up(D, 8) + 8, 128)."""
    out_f, d = weight.shape
    d8 = _round_up(d, SUBLANE)
    wb = jnp.zeros((d8 + SUBLANE, LANE), jnp.float32)
    wb = wb.at[:d, :out_f].set(jnp.asarray(weight, jnp.float32).T)   # W^T rows 0..D-1
    wb = wb.at[d8, :out_f].set(jnp.asarray(bias, jnp.float32))       # bias at row d8
    return wb


@functools.partial(jax.jit, static_argnames=("in_features", "max_tm"))
def linear_forward(x, wb, *, in_features, max_tm=1024):
    """Pallas implementation of LinearModel.forward.
    x: (N, D) or (D,) f32; wb: packed slab from prepare_params. Returns (N*4,)."""
    x2 = x if x.ndim == 2 else x[None, :]
    n, d = x2.shape
    # Footgun fix: make sure x matches the D that was baked into the slab.
    assert d == in_features, f"x feature dim {d} != packed in_features {in_features}"
    assert wb.shape == (_round_up(in_features, SUBLANE) + SUBLANE, LANE), "bad wb slab"

    # Row tiling: pad rows only to a multiple of 8 and split evenly across steps
    # (bounds padded-row waste to < 8 rows instead of up to tm-1).
    n8 = _round_up(n, SUBLANE)
    num_steps = -(-n8 // max_tm)
    tm = _round_up(-(-n8 // num_steps), SUBLANE)
    n_pad = tm * num_steps

    xf = x2.astype(jnp.float32)
    if n_pad != n:
        xp = jnp.zeros((n_pad, d), jnp.float32).at[:n, :].set(xf)
    else:
        xp = xf

    # Small batches: lane-dense 128-wide output (avoid masked-store penalty).
    # Large batches: 8-wide output (full-dim block) to cut writeback traffic.
    out_lanes = SUBLANE if n_pad >= 512 else LANE

    out = pl.pallas_call(
        linear_kernel,
        out_shape=jax.ShapeDtypeStruct((n_pad, out_lanes), jnp.float32),
        grid_spec=pltpu.PrefetchScalarGridSpec(
            num_scalar_prefetch=0,
            grid=(num_steps,),
            in_specs=[
                pl.BlockSpec((tm, d), lambda i: (i, 0)),       # x rows, unpadded D
                pl.BlockSpec(wb.shape, lambda i: (0, 0)),      # packed W|b (constant)
            ],
            out_specs=pl.BlockSpec((tm, out_lanes), lambda i: (i, 0)),
        ),
        compiler_params=pltpu.CompilerParams(
            # Independent row blocks -> shard across TensorCores when grid > 1;
            # keep single-core semantics when the grid collapses to one step.
            dimension_semantics=("parallel",) if num_steps > 1 else ("arbitrary",),
        ),
    )(xp, wb)

    # Slice the 4 real action-values and flatten (fuses under jit).
    return out[:n, :OUT_FEATURES].reshape(-1)


if __name__ == "__main__":
    # Small shapes consistent with the module: batch=2, input_size=64.
    N, INPUT_SIZE = 2, 64
    key = jax.random.PRNGKey(0)
    kw, kb, kx = jax.random.split(key, 3)
    weight = 0.1 * jax.random.normal(kw, (OUT_FEATURES, INPUT_SIZE), jnp.float32)  # w.weight
    bias = 0.1 * jax.random.normal(kb, (OUT_FEATURES,), jnp.float32)               # w.bias
    x = jax.random.normal(kx, (N, INPUT_SIZE), jnp.float32)

    wb = prepare_params(weight, bias)                                    # one-time prep
    out = jax.block_until_ready(linear_forward(x, wb, in_features=INPUT_SIZE))

    # Reference in float64; tolerance covers MXU bf16-pass decomposition of f32.
    ref = (np.asarray(x, np.float64) @ np.asarray(weight, np.float64).T
           + np.asarray(bias, np.float64)).reshape(-1)
    assert out.shape == (N * OUT_FEATURES,)
    np.testing.assert_allclose(np.asarray(out, np.float64), ref, rtol=2e-2, atol=2e-2)

    # Also exercise the large-batch path: multi-step grid, parallel semantics,
    # padded rows, and the narrow (8-lane) output writeback.
    NB = 1500
    xb = jax.random.normal(jax.random.PRNGKey(1), (NB, INPUT_SIZE), jnp.float32)
    outb = jax.block_until_ready(
        linear_forward(xb, wb, in_features=INPUT_SIZE, max_tm=512))
    refb = (np.asarray(xb, np.float64) @ np.asarray(weight, np.float64).T
            + np.asarray(bias, np.float64)).reshape(-1)
    assert outb.shape == (NB * OUT_FEATURES,)
    np.testing.assert_allclose(np.asarray(outb, np.float64), refb, rtol=2e-2, atol=2e-2)

    print("KERNEL_OK")
</pallas_src>

<mosaic_0001>
module attributes {stable_mosaic.version = 11 : i64} {
  func.func @linear_kernel(%arg0: i32, %arg1: memref<8x64xf32, #tpu.memory_space<vmem>>, %arg2: memref<72x128xf32, #tpu.memory_space<vmem>>, %arg3: memref<8x128xf32, #tpu.memory_space<vmem>>) attributes {dimension_semantics = [#tpu.dimension_semantics<arbitrary>], iteration_bounds = array<i64: 1>, scalar_prefetch = 0 : i64, scratch_operands = 0 : i64, tpu.core_type = #tpu.core_type<tc>, window_params = [{transform_indices = @transform_0, window_bounds = array<i64: 8, 64>}, {pipeline_mode = #tpu.pipeline_mode<synchronous>, transform_indices = @transform_1, window_bounds = array<i64: 72, 128>}, {transform_indices = @transform_2, window_bounds = array<i64: 8, 128>}]} {
    %c0 = arith.constant 0 : index
    %c0_0 = arith.constant 0 : index
    %0 = vector.load %arg2[%c0, %c0_0] : memref<72x128xf32, #tpu.memory_space<vmem>>, vector<64x128xf32>
    %c64 = arith.constant 64 : index
    %c0_1 = arith.constant 0 : index
    %1 = vector.load %arg2[%c64, %c0_1] : memref<72x128xf32, #tpu.memory_space<vmem>>, vector<1x128xf32>
    %c0_2 = arith.constant 0 : index
    %c0_3 = arith.constant 0 : index
    %2 = vector.load %arg1[%c0_2, %c0_3] : memref<8x64xf32, #tpu.memory_space<vmem>>, vector<8x64xf32>
    %cst = arith.constant dense<0.000000e+00> : vector<8x128xf32>
    %3 = tpu.matmul %2, %0, %cst {dimension_numbers = #tpu.dot_dimension_numbers<[1], [0], [0], [1], [0, 0, 1, 1], [], []>} : vector<8x64xf32>, vector<64x128xf32>, vector<8x128xf32> -> vector<8x128xf32>
    %4 = vector.broadcast %1 : vector<1x128xf32> to vector<8x128xf32>
    %5 = arith.addf %3, %4 : vector<8x128xf32>
    %c0_4 = arith.constant 0 : index
    %c0_5 = arith.constant 0 : index
    %6 = vector.load %arg3[%c0_4, %c0_5] : memref<8x128xf32, #tpu.memory_space<vmem>>, vector<8x128xf32>
    tpu.vector_store %arg3[%c0_4, %c0_5], %5 {strides = array<i32>} : memref<8x128xf32, #tpu.memory_space<vmem>>, vector<8x128xf32>,
    return
  }
  func.func @transform_0(%arg0: i32) -> (i32, i32) {
    %c0_i32 = arith.constant 0 : i32
    %c0_i32_0 = arith.constant 0 : i32
    return %arg0, %c0_i32 : i32, i32
  }
  func.func @transform_1(%arg0: i32) -> (i32, i32) {
    %c0_i32 = arith.constant 0 : i32
    %c0_i32_0 = arith.constant 0 : i32
    %c0_i32_1 = arith.constant 0 : i32
    return %c0_i32, %c0_i32_0 : i32, i32
  }
  func.func @transform_2(%arg0: i32) -> (i32, i32) {
    %c0_i32 = arith.constant 0 : i32
    %c0_i32_0 = arith.constant 0 : i32
    return %arg0, %c0_i32 : i32, i32
  }
}

</mosaic_0001>

<llo_original>
// kernel: linear_forward.1
$region0: #{linear_forward.1}
  #allocation0 [shape = 'u32[]', space=smem, size = 0x4, offset = 0x4, fixed_abs, tag = 'smem constant byte address 0x4 - core index']
  #allocation1 [shape = 'u32[144,128]{1,0:T(1,128)}', space=vmem, size = 0x12000, scoped, tag = 'internal scratch']
  %s0 = inlined_call_operand.vmem [shape: f32[8,64], index: 0, kind: input, shape index: {}]
  %s1 = inlined_call_operand.hbm [shape: f32[72,128], index: 1, kind: input, shape index: {}]
  %s2 = inlined_call_operand.vmem [shape: f32[8,128], index: 2, kind: output, shape index: {}]
  %s3 = sld [smem:[#allocation0]]
  $region22: #{linear_forward.1} parent=0
    _
  %s5 = ssub.s32 1, %s3
  %s6 = scalar_select 0, %s5, %s3
  $region1: #{linear_forward.1} parent=0
    #allocation2 [shape = 'u8[36864]{0}', space=vmem, size = 0x9000, scoped, tag = 'input window, operand 1, single buffered']
    #allocation3 [shape = 's32[1]{0}', space=sflag, size = 0x4, scoped, tag = 'scoped memory for linear_forward.1']
    %7 = vsyncpa [#allocation3], 0
    // Predicated region
    $region2: #{linear_forward.1} parent=1 // pred_check
      _
    $region3: #{linear_forward.1} parent=1 // pred_check_branch
      %9 = sbr.rel (0) target = $region5
    $region4: #{linear_forward.1} parent=1 // pred_region
      _
    $region5: #{linear_forward.1} parent=1 // pred_fallthru
      _
    // Predicated region
    $region6: #{linear_forward.1} parent=1 // pred_check
      _
    $region7: #{linear_forward.1} parent=1 // pred_check_branch
      %11 = sbr.rel (0) target = $region9
    $region8: #{linear_forward.1} parent=1 // pred_region
      %s13 = ssub.s32 1152, 1152
      %14 = vsyncadd [#allocation3], %s13
      %s15 = sshll.u32 [#allocation2], 4
      %s16 = int_to_ptr.vmem [resolvable:$true] %s15
      %21 = dma.hbm_to_vmem [thread:$0]  %s1, 1152, %s16, [#allocation3], 128, 128, 8
    $region9: #{linear_forward.1} parent=1 // pred_fallthru
      _
    // Predicated region
    $region10: #{linear_forward.1} parent=1 // pred_check
      _
    $region11: #{linear_forward.1} parent=1 // pred_check_branch
      %23 = sbr.rel (0) target = $region13
    $region12: #{linear_forward.1} parent=1 // pred_region
      %24 = dma.done [#allocation3], 1152
    $region13: #{linear_forward.1} parent=1 // pred_fallthru
      _
    %v25 = vld [vmem:[#allocation2] sm:$0xff]
    %v26 = vld [vmem:[#allocation2 + $0x8] sm:$0xff]
    %v27 = vld [vmem:[#allocation2 + $0x10] sm:$0xff]
    %v28 = vld [vmem:[#allocation2 + $0x18] sm:$0xff]
    %v29 = vld [vmem:[#allocation2 + $0x20] sm:$0xff]
    %v30 = vld [vmem:[#allocation2 + $0x28] sm:$0xff]
    %v31 = vld [vmem:[#allocation2 + $0x30] sm:$0xff]
    %v32 = vld [vmem:[#allocation2 + $0x38] sm:$0xff]
    %v33 = vld [vmem:[#allocation2 + $0x40] sm:$0x1]
    %v34 = vld [vmem:[%s0] sm:$0xff]
    %v35 = vlaneseq
    %v36 = vshrl.u32 %v35, 7
    %v37 = vsub.s32 0, %v36
    %v38 = vrot.slane %v33, %v37
    %vm39 = vcmask 523264
    %v41 = vsel %vm39, %v34, 0
    %43 = vmatprep.subr.mxu0 0.0
    %44 = vmatpush1.msra.mxu0 %v25
    %45 = vmatprep.subr.mxu0 0.0
    %46 = vmatpush1.msra.mxu0 %v26
    %47 = vmatprep.subr.mxu0 0.0
    %48 = vmatpush1.msra.mxu0 %v27
    %49 = vmatprep.subr.mxu0 0.0
    %50 = vmatpush1.msra.mxu0 %v28
    %51 = vmatprep.subr.mxu0 0.0
    %52 = vmatpush1.msra.mxu0 %v29
    %53 = vmatprep.subr.mxu0 0.0
    %54 = vmatpush1.msra.mxu0 %v30
    %55 = vmatprep.subr.mxu0 0.0
    %56 = vmatpush1.msra.mxu0 %v31
    %57 = vmatprep.subr.mxu0 0.0
    %58 = vmatpush1.msra.mxu0 %v32
    %59 = vmatprep.subr.mxu0 0.0
    %60 = vmatpush1.msra.mxu0 0.0
    %61 = vmatprep.subr.mxu0 0.0
    %62 = vmatpush1.msra.mxu0 0.0
    %63 = vmatprep.subr.mxu0 0.0
    %64 = vmatpush1.msra.mxu0 0.0
    %65 = vmatprep.subr.mxu0 0.0
    %66 = vmatpush1.msra.mxu0 0.0
    %67 = vmatprep.subr.mxu0 0.0
    %68 = vmatpush1.msra.mxu0 0.0
    %69 = vmatprep.subr.mxu0 0.0
    %70 = vmatpush1.msra.mxu0 0.0
    %71 = vmatprep.subr.mxu0 0.0
    %72 = vmatpush1.msra.mxu0 0.0
    %73 = vmatprep.subr.mxu0 0.0
    %74 = vmatpush1.msra.mxu0 0.0
    %75 = vmatprep.subr.mxu0 0.0
    %76 = vmatpush1.msra.mxu0 0.0
    %77 = vmatprep.subr.mxu0 0.0
    %78 = vmatpush1.msra.mxu0 0.0
    %79 = vmatprep.subr.mxu0 0.0
    %80 = vmatpush1.msra.mxu0 0.0
    %81 = vmatprep.subr.mxu0 0.0
    %82 = vmatpush1.msra.mxu0 0.0
    %83 = vmatprep.subr.mxu0 0.0
    %84 = vmatpush1.msra.mxu0 0.0
    %85 = vmatprep.subr.mxu0 0.0
    %86 = vmatpush1.msra.mxu0 0.0
    %87 = vmatprep.subr.mxu0 0.0
    %88 = vmatpush1.msra.mxu0 0.0
    %89 = vmatprep.subr.mxu0 0.0
    %90 = vmatpush1.msra.mxu0 0.0
    %91 = vmatprep.subr.mxu0 0.0
    %92 = vmatpush1.msra.mxu0 0.0
    %93 = vmatprep.subr.mxu0 0.0
    %94 = vmatpush1.msra.mxu0 0.0
    %95 = vmatprep.subr.mxu0 0.0
    %96 = vmatpush1.msra.mxu0 0.0
    %97 = vmatprep.subr.mxu0 0.0
    %98 = vmatpush1.msra.mxu0 0.0
    %99 = vmatprep.subr.mxu0 0.0
    %100 = vmatpush1.msra.mxu0 0.0
    %101 = vmatprep.subr.mxu0 0.0
    %102 = vmatpush1.msra.mxu0 0.0
    %103 = vmatprep.subr.mxu0 0.0
    %104 = vmatpush1.msra.mxu0 0.0
    %105 = vmatprep.subr.mxu0 0.0
    %106 = vmatpush1.msra.mxu0 0.0
    %107 = vmatprep.mubr.f32.mxu0 0.0
    %108 = vmatmul.mubr.f32.gmra.mrb[0].mxu0 %v41
    %v109 = vpop.f32.mrb[0].mxu0
    %v110 = vadd.f32 %v38, %v109
    %v111 = vpop.f32.mrb[0].mxu0
    %112 = vdwg.mxu0
    %113 = vst [vmem:[%s2] sm:$0xff] %v110
    // Predicated region
    $region14: #{linear_forward.1} parent=1 // pred_check
      _
    $region15: #{linear_forward.1} parent=1 // pred_check_branch
      %115 = sbr.rel (0) target = $region17
    $region16: #{linear_forward.1} parent=1 // pred_region
      _
    $region17: #{linear_forward.1} parent=1 // pred_fallthru
      _
    // Predicated region
    $region18: #{linear_forward.1} parent=1 // pred_check
      _
    $region19: #{linear_forward.1} parent=1 // pred_check_branch
      %117 = sbr.rel (0) target = $region21
    $region20: #{linear_forward.1} parent=1 // pred_region
      _
    $region21: #{linear_forward.1} parent=1 // pred_fallthru
      _
    %118 = vsyncpa [#allocation3], 1

</llo_original>
